<compile_context>
chip_gen: v6e
topology: v6e:2x2x1
jax: 0.10.0
libtpu: 0.0.40
codegen_flags: <defaults>
</compile_context>

<pallas_src>
import jax
import jax.numpy as jnp
from jax.experimental import pallas as pl
from jax.experimental.pallas import tpu as pltpu

MARGIN = 2.0
EPS = 1e-6  # torch F.pairwise_distance default eps


def _round_up(x, m):
    return ((x + m - 1) // m) * m


def _choose_tile_b(b, d, itemsize):
    """Largest row tile s.t. 2 inputs x 2 pipeline buffers stay <= ~12 MiB VMEM."""
    budget = 12 * 1024 * 1024
    max_rows = max(8, budget // (4 * d * itemsize))
    tile = min(1024, max_rows, _round_up(b, 8))
    return max(8, (tile // 8) * 8)


def _make_kernel(*, true_b, tile_b, margin, needs_mask):
    def kernel(o1_ref, o2_ref, lbl_ref, out_ref):
        o1 = o1_ref[...].astype(jnp.float32)        # [tile_b, D]
        o2 = o2_ref[...].astype(jnp.float32)        # [tile_b, D]
        lbl = lbl_ref[...].astype(jnp.float32)      # [tile_b, 1]

        # F.pairwise_distance: ||x1 - x2 + eps||_2 along D, keepdim=True.
        diff = o1 - o2 + EPS
        sq_sum = jnp.sum(diff * diff, axis=-1, keepdims=True)   # [tile_b, 1]
        dist = jnp.sqrt(sq_sum)

        hinge = jnp.maximum(margin - dist, 0.0)
        # dist*dist (not sq_sum) to reproduce torch's pow(dist, 2) path exactly.
        per_pair = (1.0 - lbl) * (dist * dist) + lbl * (hinge * hinge)

        if needs_mask:
            row = jax.lax.broadcasted_iota(jnp.int32, (tile_b, 1), 0)
            valid = (pl.program_id(0) * tile_b + row) < true_b
            per_pair = jnp.where(valid, per_pair, 0.0)

        partial = jnp.sum(per_pair)                 # scalar partial for this tile
        # Splat into a full (8, 128) lane-dense block -> unmasked store path.
        out_ref[...] = jnp.broadcast_to(partial, (8, 128))

    return kernel


def contrastive_loss(output1, output2, label, margin=MARGIN, tile_b=None):
    """output1, output2: [B, D]; label: [B, 1] or [B]. Returns f32 scalar loss."""
    B, D = output1.shape
    assert output2.shape == (B, D)
    label = jnp.reshape(label, (B, 1)).astype(jnp.float32)

    itemsize = jnp.dtype(output1.dtype).itemsize
    if tile_b is None:
        tile_b = _choose_tile_b(B, D, itemsize)
    b_pad = _round_up(B, tile_b)
    num_tiles = b_pad // tile_b

    if b_pad != B:
        pad = b_pad - B
        output1 = jnp.pad(output1, ((0, pad), (0, 0)))
        output2 = jnp.pad(output2, ((0, pad), (0, 0)))
        label = jnp.pad(label, ((0, pad), (0, 0)))

    kernel = _make_kernel(true_b=B, tile_b=tile_b, margin=float(margin),
                          needs_mask=(b_pad != B))

    cost = pl.CostEstimate(
        flops=4 * B * D + 10 * B,
        transcendentals=B,
        bytes_accessed=2 * b_pad * D * itemsize + b_pad * 4
        + num_tiles * 8 * 128 * 4,
    )

    partials = pl.pallas_call(
        kernel,
        out_shape=jax.ShapeDtypeStruct((8 * num_tiles, 128), jnp.float32),
        grid=(num_tiles,),
        in_specs=[
            pl.BlockSpec((tile_b, D), lambda i: (i, 0)),
            pl.BlockSpec((tile_b, D), lambda i: (i, 0)),
            pl.BlockSpec((tile_b, 1), lambda i: (i, 0)),
        ],
        out_specs=pl.BlockSpec((8, 128), lambda i: (i, 0)),
        compiler_params=pltpu.CompilerParams(
            dimension_semantics=("parallel",),
        ),
        cost_estimate=cost,
    )(output1, output2, label)

    # Row 8*i, lane 0 holds tile i's partial sum (each block is a splat).
    per_tile = partials[::8, 0]
    return jnp.sum(per_tile) / B


def _reference_loss(output1, output2, label):
    o1 = output1.astype(jnp.float32)
    o2 = output2.astype(jnp.float32)
    lbl = jnp.reshape(label, (o1.shape[0], 1)).astype(jnp.float32)
    diff = o1 - o2 + EPS
    dist = jnp.sqrt(jnp.sum(diff * diff, axis=-1, keepdims=True))
    hinge = jnp.maximum(MARGIN - dist, 0.0)
    return jnp.mean((1.0 - lbl) * dist**2 + lbl * hinge**2)


if __name__ == "__main__":
    key = jax.random.PRNGKey(0)
    k1, k2, k3 = jax.random.split(key, 3)

    # Small case consistent with the Siamese-CNN embeddings.
    B, D = 8, 32
    output1 = jax.random.normal(k1, (B, D), dtype=jnp.float32)
    output2 = jax.random.normal(k2, (B, D), dtype=jnp.float32)
    label = jax.random.bernoulli(k3, 0.5, (B, 1)).astype(jnp.float32)

    loss = jax.block_until_ready(contrastive_loss(output1, output2, label))
    ref = _reference_loss(output1, output2, label)
    assert jnp.allclose(loss, ref, rtol=1e-5, atol=1e-5), (loss, ref)

    # Multi-tile + padded-tail path (B not a multiple of the row tile).
    B2, D2 = 300, 128
    o1 = jax.random.normal(k1, (B2, D2), dtype=jnp.float32)
    o2 = jax.random.normal(k2, (B2, D2), dtype=jnp.float32)
    lb = jax.random.bernoulli(k3, 0.5, (B2, 1)).astype(jnp.float32)
    loss2 = jax.block_until_ready(contrastive_loss(o1, o2, lb, tile_b=128))
    ref2 = _reference_loss(o1, o2, lb)
    assert jnp.allclose(loss2, ref2, rtol=1e-5, atol=1e-5), (loss2, ref2)

    print("KERNEL_OK")
</pallas_src>

<mosaic_0001>
module attributes {stable_mosaic.version = 11 : i64} {
  func.func @kernel(%arg0: i32, %arg1: memref<8x32xf32, #tpu.memory_space<vmem>>, %arg2: memref<8x32xf32, #tpu.memory_space<vmem>>, %arg3: memref<8x1xf32, #tpu.memory_space<vmem>>, %arg4: memref<8x128xf32, #tpu.memory_space<vmem>>) attributes {dimension_semantics = [#tpu.dimension_semantics<parallel>], iteration_bounds = array<i64: 1>, scalar_prefetch = 0 : i64, scratch_operands = 0 : i64, tpu.core_type = #tpu.core_type<tc>, window_params = [{transform_indices = @transform_0, window_bounds = array<i64: 8, 32>}, {transform_indices = @transform_1, window_bounds = array<i64: 8, 32>}, {transform_indices = @transform_2, window_bounds = array<i64: 8, 1>}, {transform_indices = @transform_3, window_bounds = array<i64: 8, 128>}]} {
    %c0 = arith.constant 0 : index
    %c0_0 = arith.constant 0 : index
    %0 = vector.load %arg1[%c0, %c0_0] : memref<8x32xf32, #tpu.memory_space<vmem>>, vector<8x32xf32>
    %c0_1 = arith.constant 0 : index
    %c0_2 = arith.constant 0 : index
    %1 = vector.load %arg2[%c0_1, %c0_2] : memref<8x32xf32, #tpu.memory_space<vmem>>, vector<8x32xf32>
    %c0_3 = arith.constant 0 : index
    %c0_4 = arith.constant 0 : index
    %2 = vector.load %arg3[%c0_3, %c0_4] : memref<8x1xf32, #tpu.memory_space<vmem>>, vector<8x1xf32>
    %3 = arith.subf %0, %1 : vector<8x32xf32>
    %cst = arith.constant 9.99999997E-7 : f32
    %4 = vector.broadcast %cst : f32 to vector<8x32xf32>
    %5 = arith.addf %3, %4 : vector<8x32xf32>
    %6 = arith.mulf %5, %5 : vector<8x32xf32>
    %cst_5 = arith.constant dense<0.000000e+00> : vector<8xf32>
    %7 = vector.multi_reduction <add>, %6, %cst_5 [1] : vector<8x32xf32> to vector<8xf32>
    %8 = vector.shape_cast %7 : vector<8xf32> to vector<8x1xf32>
    %9 = math.sqrt %8 : vector<8x1xf32>
    %cst_6 = arith.constant 2.000000e+00 : f32
    %10 = vector.broadcast %cst_6 : f32 to vector<8x1xf32>
    %11 = arith.subf %10, %9 : vector<8x1xf32>
    %cst_7 = arith.constant 0.000000e+00 : f32
    %12 = vector.broadcast %cst_7 : f32 to vector<8x1xf32>
    %13 = arith.maximumf %11, %12 : vector<8x1xf32>
    %cst_8 = arith.constant 1.000000e+00 : f32
    %14 = vector.broadcast %cst_8 : f32 to vector<8x1xf32>
    %15 = arith.subf %14, %2 : vector<8x1xf32>
    %16 = arith.mulf %9, %9 : vector<8x1xf32>
    %17 = arith.mulf %15, %16 : vector<8x1xf32>
    %18 = arith.mulf %13, %13 : vector<8x1xf32>
    %19 = arith.mulf %2, %18 : vector<8x1xf32>
    %20 = arith.addf %17, %19 : vector<8x1xf32>
    %21 = vector.shape_cast %20 : vector<8x1xf32> to vector<1x8x1xf32>
    %cst_9 = arith.constant dense<0.000000e+00> : vector<1xf32>
    %22 = vector.multi_reduction <add>, %21, %cst_9 [1, 2] : vector<1x8x1xf32> to vector<1xf32>
    %23 = vector.shape_cast %22 : vector<1xf32> to vector<1x1x1xf32>
    %24 = vector.extract %23[0, 0, 0] : f32 from vector<1x1x1xf32>
    %25 = vector.broadcast %24 : f32 to vector<8x128xf32>
    %c0_10 = arith.constant 0 : index
    %c0_11 = arith.constant 0 : index
    %26 = vector.load %arg4[%c0_10, %c0_11] : memref<8x128xf32, #tpu.memory_space<vmem>>, vector<8x128xf32>
    tpu.vector_store %arg4[%c0_10, %c0_11], %25 {strides = array<i32>} : memref<8x128xf32, #tpu.memory_space<vmem>>, vector<8x128xf32>,
    return
  }
  func.func @transform_0(%arg0: i32) -> (i32, i32) {
    %c0_i32 = arith.constant 0 : i32
    %c0_i32_0 = arith.constant 0 : i32
    return %arg0, %c0_i32 : i32, i32
  }
  func.func @transform_1(%arg0: i32) -> (i32, i32) {
    %c0_i32 = arith.constant 0 : i32
    %c0_i32_0 = arith.constant 0 : i32
    return %arg0, %c0_i32 : i32, i32
  }
  func.func @transform_2(%arg0: i32) -> (i32, i32) {
    %c0_i32 = arith.constant 0 : i32
    %c0_i32_0 = arith.constant 0 : i32
    return %arg0, %c0_i32 : i32, i32
  }
  func.func @transform_3(%arg0: i32) -> (i32, i32) {
    %c0_i32 = arith.constant 0 : i32
    %c0_i32_0 = arith.constant 0 : i32
    return %arg0, %c0_i32 : i32, i32
  }
}

</mosaic_0001>

<llo_original>
// kernel: tpu_custom_call.1
$region0: #{tpu_custom_call.1}
  #allocation0 [shape = 'u32[]', space=smem, size = 0x4, offset = 0x4, fixed_abs, tag = 'smem constant byte address 0x4 - core index']
  #allocation1 [shape = 'u32[144,128]{1,0:T(1,128)}', space=vmem, size = 0x12000, scoped, tag = 'internal scratch']
  %s0 = inlined_call_operand.vmem [shape: f32[8,32], index: 0, kind: input, shape index: {}]
  %s1 = inlined_call_operand.hbm [shape: f32[8,32], index: 1, kind: input, shape index: {}]
  %s2 = inlined_call_operand.vmem [shape: f32[8,1], index: 2, kind: input, shape index: {}]
  %s3 = inlined_call_operand.hbm [shape: f32[8,128], index: 3, kind: output, shape index: {}]
  %s4 = sld [smem:[#allocation0]]
  $region26: #{tpu_custom_call.1} parent=0
    _
  %s6 = ssub.s32 1, %s4
  %s7 = scalar_select 0, %s6, %s4
  $region1: #{tpu_custom_call.1} parent=0
    #allocation2 [shape = 'u8[4096]{0}', space=vmem, size = 0x1000, scoped, tag = 'input window, operand 1, single buffered']
    #allocation3 [shape = 's32[1]{0}', space=sflag, size = 0x4, scoped, tag = 'scoped memory for tpu_custom_call.1']
    #allocation4 [shape = 's32[1]{0}', space=sflag, size = 0x4, scoped, tag = 'scoped memory for tpu_custom_call.1']
    #allocation5 [shape = 'u8[4096]{0}', space=vmem, size = 0x1000, scoped, tag = 'output window, operand 0, single buffered']
    %8 = vsyncpa [#allocation3], 0
    %9 = vsyncpa [#allocation4], 0
    // Predicated region
    $region2: #{tpu_custom_call.1} parent=1 // pred_check
      _
    $region3: #{tpu_custom_call.1} parent=1 // pred_check_branch
      %11 = sbr.rel (0) target = $region5
    $region4: #{tpu_custom_call.1} parent=1 // pred_region
      _
    $region5: #{tpu_custom_call.1} parent=1 // pred_fallthru
      _
    // Predicated region
    $region6: #{tpu_custom_call.1} parent=1 // pred_check
      _
    $region7: #{tpu_custom_call.1} parent=1 // pred_check_branch
      %13 = sbr.rel (0) target = $region9
    $region8: #{tpu_custom_call.1} parent=1 // pred_region
      %s15 = ssub.s32 128, 128
      %16 = vsyncadd [#allocation3], %s15
      %s18 = sshll.u32 [#allocation2], 4
      %s19 = int_to_ptr.vmem [resolvable:$true] %s18
      %21 = dma.hbm_to_vmem [thread:$0]  %s1, 128, %s19, [#allocation3]
    $region9: #{tpu_custom_call.1} parent=1 // pred_fallthru
      _
    // Predicated region
    $region10: #{tpu_custom_call.1} parent=1 // pred_check
      _
    $region11: #{tpu_custom_call.1} parent=1 // pred_check_branch
      %23 = sbr.rel (0) target = $region13
    $region12: #{tpu_custom_call.1} parent=1 // pred_region
      _
    $region13: #{tpu_custom_call.1} parent=1 // pred_fallthru
      _
    // Predicated region
    $region14: #{tpu_custom_call.1} parent=1 // pred_check
      _
    $region15: #{tpu_custom_call.1} parent=1 // pred_check_branch
      %25 = sbr.rel (0) target = $region17
    $region16: #{tpu_custom_call.1} parent=1 // pred_region
      %26 = dma.done [#allocation3], 128
    $region17: #{tpu_custom_call.1} parent=1 // pred_fallthru
      _
    %v27 = vld [vmem:[%s0] sm:$0xff]
    %v28 = vld [vmem:[#allocation2] sm:$0xff]
    %v29 = vld [vmem:[%s2] sm:$0xff]
    %v30 = vsub.f32 %v27, %v28
    %v31 = vadd.f32 %v30, 1e-06
    %v32 = vmul.f32 %v31, %v31
    %vm33 = vcmask 261120
    %v34 = vsel %vm33, %v32, 0.0
    %35 = vadd.xlane.f32.xlu0 %v34
    %v36 = vpop.xlane.xlu0 %35
    %v37 = vrsqrt.pop %v36
    %v38 = vmul.f32 %v36, %v37
    %vm39 = vcmp.eq.f32.partialorder %v36, inf
    %v40 = vsel %vm39, %v36, %v38
    %vm41 = vcmp.eq.f32.partialorder %v36, 0.0
    %v42 = vand.u32 %v36, 2147483648
    %v43 = vsel %vm41, %v42, %v40
    %v44 = vsub.f32 2.0, %v43
    %v45 = vmax.f32 %v44, 0.0
    %v46 = vsub.f32 1.0, %v29
    %v47 = vmul.f32 %v43, %v43
    %v48 = vmul.f32 %v46, %v47
    %v49 = vmul.f32 %v45, %v45
    %v50 = vmul.f32 %v29, %v49
    %v51 = vadd.f32 %v48, %v50
    %vm52 = vcmask 7168
    %v53 = vsel %vm52, %v51, 0.0
    %54 = vadd.xlane.f32.xlu0 %v53
    %v55 = vpop.xlane.xlu0 %54
    %v56 = vrot.slane %v55, 4
    %v57 = vadd.f32 %v55, %v56
    %v58 = vrot.slane %v57, 2
    %v59 = vadd.f32 %v57, %v58
    %v60 = vrot.slane %v59, 1
    %v61 = vadd.f32 %v59, %v60
    %s62 = vtos %v61
    %v63 = vstv %s62
    %64 = vst [vmem:[#allocation5] sm:$0xff] %v63
    // Predicated region
    $region18: #{tpu_custom_call.1} parent=1 // pred_check
      _
    $region19: #{tpu_custom_call.1} parent=1 // pred_check_branch
      %66 = sbr.rel (0) target = $region21
    $region20: #{tpu_custom_call.1} parent=1 // pred_region
      %s68 = ssub.s32 128, 128
      %69 = vsyncadd [#allocation4], %s68
      %s71 = sshll.u32 [#allocation5], 4
      %s72 = int_to_ptr.vmem [resolvable:$true] %s71
      %74 = dma.vmem_to_hbm [thread:$0]  %s72, 128, %s3, [#allocation4]
    $region21: #{tpu_custom_call.1} parent=1 // pred_fallthru
      _
    // Predicated region
    $region22: #{tpu_custom_call.1} parent=1 // pred_check
      _
    $region23: #{tpu_custom_call.1} parent=1 // pred_check_branch
      %76 = sbr.rel (0) target = $region25
    $region24: #{tpu_custom_call.1} parent=1 // pred_region
      %77 = dma.done [#allocation4], 128
    $region25: #{tpu_custom_call.1} parent=1 // pred_fallthru
      _
    %78 = vsyncpa [#allocation3], 1
    %79 = vsyncpa [#allocation4], 1

</llo_original>
